<compile_context>
chip_gen: v5e
topology: v5e:2x2
jax: 0.10.0
libtpu: 0.0.40
codegen_flags: <defaults>
</compile_context>

<pallas_src>
import functools
import math

import jax
import jax.numpy as jnp
from jax import lax
from jax.experimental import pallas as pl
from jax.experimental.pallas import tpu as pltpu


def _self_attn_kernel(x_ref, w_ref, vec_ref, out_ref, *opt_refs,
                      num_heads, d_model, seq_len, block_b, eps, need_weights):
    """One block of TB batch elements per grid step: pre-LN + causal MHA + residual."""
    D = d_model
    H = num_heads
    Hd = D // H
    L = seq_len
    TB = block_b
    R = TB * L
    attn_ref = opt_refs[0] if need_weights else None

    # ---- packed parameter slabs ------------------------------------------------
    w_in_t = w_ref[:, 0:3 * D]               # (D, 3D) bf16, Q columns pre-scaled
    w_out_t = w_ref[:, 3 * D:4 * D]          # (D, D)  bf16
    b_in = vec_ref[:, 0:3 * D]               # (1, 3D) f32, Q part pre-scaled
    b_out = vec_ref[:, 3 * D:4 * D]          # (1, D)
    gamma = vec_ref[:, 4 * D:5 * D]          # (1, D)
    beta = vec_ref[:, 5 * D:6 * D]           # (1, D)

    x = x_ref[...].reshape(R, D)             # (R, D) f32, residual source

    # ---- LayerNorm (pre-norm) over all TB*L rows, f32 on the VPU ----------------
    mu = jnp.mean(x, axis=-1, keepdims=True)
    var = jnp.mean((x - mu) ** 2, axis=-1, keepdims=True)
    xn = (x - mu) * lax.rsqrt(var + eps)
    xn = xn * gamma + beta

    # ---- fused QKV projection: one MXU contraction over TB*L rows ---------------
    qkv = jnp.dot(xn.astype(jnp.bfloat16), w_in_t,
                  preferred_element_type=jnp.float32) + b_in        # (R, 3D) f32
    qkv = qkv.astype(jnp.bfloat16).reshape(TB, L, 3 * D)

    # ---- causal additive mask synthesized in-kernel (no HBM/VMEM mask input) ----
    row = lax.broadcasted_iota(jnp.int32, (L, L), 0)
    col = lax.broadcasted_iota(jnp.int32, (L, L), 1)
    neg_mask = jnp.where(col > row, jnp.float32(-1e30), jnp.float32(0.0))

    # ---- per-head attention; output projection accumulated per head -------------
    acc = jnp.zeros((R, D), jnp.float32)                 # out-proj accumulator
    attn_acc = jnp.zeros((TB, L, L), jnp.float32) if need_weights else None
    for h in range(H):                                   # static unroll over heads
        qh = qkv[:, :, h * Hd:(h + 1) * Hd]              # (TB, L, Hd) bf16
        kh = qkv[:, :, D + h * Hd:D + (h + 1) * Hd]
        vh = qkv[:, :, 2 * D + h * Hd:2 * D + (h + 1) * Hd]
        # scale already folded into Q, so scores are just q.k^T + mask
        s = jnp.einsum('bqd,bkd->bqk', qh, kh,
                       preferred_element_type=jnp.float32) + neg_mask
        s = s - jnp.max(s, axis=-1, keepdims=True)
        p = jnp.exp(s)
        # exact reciprocal so returned attention weights are exactly row-normalized
        p = p * pl.reciprocal(jnp.sum(p, axis=-1, keepdims=True), approx=False)
        if need_weights:
            attn_acc = attn_acc + p
        ctx_h = jnp.einsum('bqk,bkd->bqd', p.astype(jnp.bfloat16), vh,
                           preferred_element_type=jnp.float32)      # (TB, L, Hd)
        # fold this head's output projection in now (no ctx scratch / masked stores)
        acc = acc + jnp.dot(ctx_h.reshape(R, Hd).astype(jnp.bfloat16),
                            w_out_t[h * Hd:(h + 1) * Hd, :],
                            preferred_element_type=jnp.float32)     # (R, D)

    # ---- bias + residual (dropout p=0.0 == identity) -----------------------------
    out_ref[...] = (x + acc + b_out).reshape(TB, L, D)
    if need_weights:
        attn_ref[...] = attn_acc * (1.0 / H)             # average_attn_weights=True


def _pick_block_b(batch, seq_len, target_rows=256):
    """Largest divisor of `batch` whose row count TB*L stays near the MXU row target."""
    tb = 1
    for cand in range(1, batch + 1):
        if batch % cand == 0 and cand * seq_len <= target_rows:
            tb = cand
    return tb


def self_attention_layer(x, params, num_heads, need_weights=True):
    """x: (B, L, D) f32. Causal self-attention. Returns (out[, avg attn weights])."""
    B, L, D = x.shape
    w_in, b_in, w_out, b_out, gamma, beta = params
    Hd = D // num_heads
    scale = 1.0 / math.sqrt(Hd)

    # Wrapper-side (one-time) parameter prep:
    #  - fold the softmax scale into the Q rows of the in-projection weight / bias
    #  - pre-transpose so the kernel does y = x @ W_t (no in-kernel .T / relayout)
    #  - pack both projection weights into one bf16 slab, all vectors into one f32 slab
    w_in_s = jnp.concatenate([w_in[:D] * scale, w_in[D:]], axis=0)       # (3D, D)
    b_in_s = jnp.concatenate([b_in[:D] * scale, b_in[D:]], axis=0)       # (3D,)
    w_slab = jnp.concatenate([w_in_s.T, w_out.T], axis=1).astype(jnp.bfloat16)  # (D, 4D)
    vec_slab = jnp.concatenate([b_in_s, b_out, gamma, beta], axis=0)     # (6D,)
    vec_slab = vec_slab.reshape(1, 6 * D).astype(jnp.float32)

    TB = _pick_block_b(B, L)
    grid = (B // TB,)

    kernel = functools.partial(_self_attn_kernel, num_heads=num_heads, d_model=D,
                               seq_len=L, block_b=TB, eps=1e-5,
                               need_weights=need_weights)

    out_shape = [jax.ShapeDtypeStruct((B, L, D), jnp.float32)]
    out_specs = [pl.BlockSpec((TB, L, D), lambda i: (i, 0, 0))]
    if need_weights:
        out_shape.append(jax.ShapeDtypeStruct((B, L, L), jnp.float32))
        out_specs.append(pl.BlockSpec((TB, L, L), lambda i: (i, 0, 0)))

    results = pl.pallas_call(
        kernel,
        out_shape=tuple(out_shape),
        grid_spec=pltpu.PrefetchScalarGridSpec(
            num_scalar_prefetch=0,
            grid=grid,
            in_specs=[
                pl.BlockSpec((TB, L, D), lambda i: (i, 0, 0)),     # x block
                pl.BlockSpec((D, 4 * D), lambda i: (0, 0)),        # packed bf16 weights
                pl.BlockSpec((1, 6 * D), lambda i: (0, 0)),        # packed f32 vectors
            ],
            out_specs=out_specs,
        ),
        compiler_params=pltpu.CompilerParams(
            # batch-block axis is independent -> shards across the 2 TCs on v7x when
            # there are several steps per core; harmless for a 1-step grid.
            dimension_semantics=("parallel",),
        ),
    )(x, w_slab, vec_slab)

    if need_weights:
        return results[0], results[1]
    return results[0], None


def _reference(x, attn_mask, params, num_heads):
    """Pure-JAX f32 reference mirroring nn.LayerNorm + nn.MultiheadAttention(batch_first)."""
    w_in, b_in, w_out, b_out, gamma, beta = params
    B, L, D = x.shape
    H = num_heads
    Hd = D // H
    mu = jnp.mean(x, axis=-1, keepdims=True)
    var = jnp.mean((x - mu) ** 2, axis=-1, keepdims=True)
    xn = (x - mu) / jnp.sqrt(var + 1e-5) * gamma + beta
    qkv = xn @ w_in.T + b_in                                   # (B, L, 3D)
    q, k, v = jnp.split(qkv, 3, axis=-1)
    q = q.reshape(B, L, H, Hd).transpose(0, 2, 1, 3)
    k = k.reshape(B, L, H, Hd).transpose(0, 2, 1, 3)
    v = v.reshape(B, L, H, Hd).transpose(0, 2, 1, 3)
    s = jnp.einsum("bhqd,bhkd->bhqk", q, k) / jnp.sqrt(Hd) + attn_mask
    p = jax.nn.softmax(s, axis=-1)
    ctx = jnp.einsum("bhqk,bhkd->bhqd", p, v).transpose(0, 2, 1, 3).reshape(B, L, D)
    out = ctx @ w_out.T + b_out
    return x + out, jnp.mean(p, axis=1)


if __name__ == "__main__":
    B, L, D, H = 2, 8, 32, 4

    key = jax.random.PRNGKey(0)
    kx, k1, k2, k3, k4, k5, k6 = jax.random.split(key, 7)
    x = jax.random.normal(kx, (B, L, D), dtype=jnp.float32)

    # Deterministic parameter init (shapes match nn.MultiheadAttention / nn.LayerNorm).
    w_in = 0.1 * jax.random.normal(k1, (3 * D, D), dtype=jnp.float32)   # in_proj_weight
    b_in = 0.1 * jax.random.normal(k2, (3 * D,), dtype=jnp.float32)     # in_proj_bias
    w_out = 0.1 * jax.random.normal(k3, (D, D), dtype=jnp.float32)      # out_proj.weight
    b_out = 0.1 * jax.random.normal(k4, (D,), dtype=jnp.float32)        # out_proj.bias
    gamma = 1.0 + 0.1 * jax.random.normal(k5, (D,), dtype=jnp.float32)  # LayerNorm weight
    beta = 0.1 * jax.random.normal(k6, (D,), dtype=jnp.float32)         # LayerNorm bias
    params = (w_in, b_in, w_out, b_out, gamma, beta)

    # Reference uses an explicit additive causal mask (kernel synthesizes the same one).
    attn_mask = jnp.triu(jnp.full((L, L), -1e30, dtype=jnp.float32), k=1)

    out, attn = self_attention_layer(x, params, H, need_weights=True)
    out, attn = jax.block_until_ready((out, attn))

    ref_out, ref_attn = _reference(x, attn_mask, params, H)
    # Tolerance accounts for bf16 MXU operands vs. the f32 reference.
    assert jnp.allclose(out, ref_out, atol=2e-2, rtol=2e-2)
    assert jnp.allclose(attn, ref_attn, atol=2e-2, rtol=2e-2)

    print("KERNEL_OK")
</pallas_src>

<mosaic_0001>
module attributes {stable_mosaic.version = 11 : i64} {
  func.func @_self_attn_kernel(%arg0: i32, %arg1: memref<2x8x32xf32, #tpu.memory_space<vmem>>, %arg2: memref<32x128xbf16, #tpu.memory_space<vmem>>, %arg3: memref<1x192xf32, #tpu.memory_space<vmem>>, %arg4: memref<2x8x32xf32, #tpu.memory_space<vmem>>, %arg5: memref<2x8x8xf32, #tpu.memory_space<vmem>>) attributes {dimension_semantics = [#tpu.dimension_semantics<parallel>], iteration_bounds = array<i64: 1>, scalar_prefetch = 0 : i64, scratch_operands = 0 : i64, tpu.core_type = #tpu.core_type<tc>, window_params = [{transform_indices = @transform_0, window_bounds = array<i64: 2, 8, 32>}, {pipeline_mode = #tpu.pipeline_mode<synchronous>, transform_indices = @transform_1, window_bounds = array<i64: 32, 128>}, {pipeline_mode = #tpu.pipeline_mode<synchronous>, transform_indices = @transform_2, window_bounds = array<i64: 1, 192>}, {transform_indices = @transform_3, window_bounds = array<i64: 2, 8, 32>}, {transform_indices = @transform_4, window_bounds = array<i64: 2, 8, 8>}]} {
    %c0 = arith.constant 0 : index
    %c0_0 = arith.constant 0 : index
    %0 = vector.load %arg2[%c0, %c0_0] : memref<32x128xbf16, #tpu.memory_space<vmem>>, vector<32x96xbf16>
    %c0_1 = arith.constant 0 : index
    %c96 = arith.constant 96 : index
    %1 = vector.load %arg2[%c0_1, %c96] : memref<32x128xbf16, #tpu.memory_space<vmem>>, vector<32x32xbf16>
    %c0_2 = arith.constant 0 : index
    %c0_3 = arith.constant 0 : index
    %2 = vector.load %arg3[%c0_2, %c0_3] : memref<1x192xf32, #tpu.memory_space<vmem>>, vector<1x96xf32>
    %c0_4 = arith.constant 0 : index
    %c96_5 = arith.constant 96 : index
    %3 = vector.load %arg3[%c0_4, %c96_5] : memref<1x192xf32, #tpu.memory_space<vmem>>, vector<1x32xf32>
    %c0_6 = arith.constant 0 : index
    %c128 = arith.constant 128 : index
    %4 = vector.load %arg3[%c0_6, %c128] : memref<1x192xf32, #tpu.memory_space<vmem>>, vector<1x32xf32>
    %c0_7 = arith.constant 0 : index
    %c160 = arith.constant 160 : index
    %5 = vector.load %arg3[%c0_7, %c160] : memref<1x192xf32, #tpu.memory_space<vmem>>, vector<1x32xf32>
    %c0_8 = arith.constant 0 : index
    %c0_9 = arith.constant 0 : index
    %c0_10 = arith.constant 0 : index
    %6 = vector.load %arg1[%c0_8, %c0_9, %c0_10] : memref<2x8x32xf32, #tpu.memory_space<vmem>>, vector<2x8x32xf32>
    %7 = vector.shape_cast %6 : vector<2x8x32xf32> to vector<16x32xf32>
    %cst = arith.constant dense<0.000000e+00> : vector<16xf32>
    %8 = vector.multi_reduction <add>, %7, %cst [1] : vector<16x32xf32> to vector<16xf32>
    %9 = vector.shape_cast %8 : vector<16xf32> to vector<16x1xf32>
    %cst_11 = arith.constant 3.200000e+01 : f32
    %10 = vector.broadcast %cst_11 : f32 to vector<16x1xf32>
    %11 = arith.divf %9, %10 : vector<16x1xf32>
    %12 = vector.broadcast %11 : vector<16x1xf32> to vector<16x32xf32>
    %13 = arith.subf %7, %12 : vector<16x32xf32>
    %14 = arith.mulf %13, %13 : vector<16x32xf32>
    %cst_12 = arith.constant dense<0.000000e+00> : vector<16xf32>
    %15 = vector.multi_reduction <add>, %14, %cst_12 [1] : vector<16x32xf32> to vector<16xf32>
    %16 = vector.shape_cast %15 : vector<16xf32> to vector<16x1xf32>
    %cst_13 = arith.constant 3.200000e+01 : f32
    %17 = vector.broadcast %cst_13 : f32 to vector<16x1xf32>
    %18 = arith.divf %16, %17 : vector<16x1xf32>
    %19 = vector.broadcast %11 : vector<16x1xf32> to vector<16x32xf32>
    %20 = arith.subf %7, %19 : vector<16x32xf32>
    %cst_14 = arith.constant 9.99999974E-6 : f32
    %21 = vector.broadcast %cst_14 : f32 to vector<16x1xf32>
    %22 = arith.addf %18, %21 : vector<16x1xf32>
    %23 = math.rsqrt %22 : vector<16x1xf32>
    %24 = vector.broadcast %23 : vector<16x1xf32> to vector<16x32xf32>
    %25 = arith.mulf %20, %24 : vector<16x32xf32>
    %26 = vector.broadcast %4 : vector<1x32xf32> to vector<16x32xf32>
    %27 = arith.mulf %25, %26 : vector<16x32xf32>
    %28 = vector.broadcast %5 : vector<1x32xf32> to vector<16x32xf32>
    %29 = arith.addf %27, %28 : vector<16x32xf32>
    %30 = arith.truncf %29 : vector<16x32xf32> to vector<16x32xbf16>
    %cst_15 = arith.constant dense<0.000000e+00> : vector<16x96xf32>
    %31 = tpu.matmul %30, %0, %cst_15 {dimension_numbers = #tpu.dot_dimension_numbers<[1], [0], [0], [1], [0, 0, 1, 1], [], []>} : vector<16x32xbf16>, vector<32x96xbf16>, vector<16x96xf32> -> vector<16x96xf32>
    %32 = vector.broadcast %2 : vector<1x96xf32> to vector<16x96xf32>
    %33 = arith.addf %31, %32 : vector<16x96xf32>
    %34 = arith.truncf %33 : vector<16x96xf32> to vector<16x96xbf16>
    %35 = vector.shape_cast %34 : vector<16x96xbf16> to vector<2x8x96xbf16>
    %36 = tpu.iota {dimensions = array<i32: 0>} : vector<8x8xi32>
    %37 = tpu.iota {dimensions = array<i32: 1>} : vector<8x8xi32>
    %38 = arith.cmpi sgt, %37, %36 : vector<8x8xi32>
    %cst_16 = arith.constant -1.000000e+30 : f32
    %cst_17 = arith.constant 0.000000e+00 : f32
    %39 = vector.broadcast %cst_16 : f32 to vector<8x8xf32>
    %40 = vector.broadcast %cst_17 : f32 to vector<8x8xf32>
    %41 = arith.select %38, %39, %40 : vector<8x8xi1>, vector<8x8xf32>
    %cst_18 = arith.constant 0.000000e+00 : f32
    %42 = vector.broadcast %cst_18 : f32 to vector<16x32xf32>
    %cst_19 = arith.constant 0.000000e+00 : f32
    %43 = vector.broadcast %cst_19 : f32 to vector<2x8x8xf32>
    %44 = vector.extract_strided_slice %35 {offsets = [0, 0, 0], sizes = [2, 8, 8], strides = [1, 1, 1]} : vector<2x8x96xbf16> to vector<2x8x8xbf16>
    %45 = vector.extract_strided_slice %35 {offsets = [0, 0, 32], sizes = [2, 8, 8], strides = [1, 1, 1]} : vector<2x8x96xbf16> to vector<2x8x8xbf16>
    %46 = vector.extract_strided_slice %35 {offsets = [0, 0, 64], sizes = [2, 8, 8], strides = [1, 1, 1]} : vector<2x8x96xbf16> to vector<2x8x8xbf16>
    "tpu.trace_start"() <{level = 10 : i32, message = "bqd,bkd->bqk"}> : () -> ()
    %cst_20 = arith.constant dense<0.000000e+00> : vector<2x8x8xf32>
    %47 = tpu.matmul %44, %45, %cst_20 {dimension_numbers = #tpu.dot_dimension_numbers<[2], [2], [1], [1], [0, 0, 0, 1, 1, 1], [0], [0]>} : vector<2x8x8xbf16>, vector<2x8x8xbf16>, vector<2x8x8xf32> -> vector<2x8x8xf32>
    "tpu.trace_stop"() : () -> ()
    %48 = vector.shape_cast %41 : vector<8x8xf32> to vector<1x8x8xf32>
    %49 = vector.broadcast %48 : vector<1x8x8xf32> to vector<2x8x8xf32>
    %50 = arith.addf %47, %49 : vector<2x8x8xf32>
    %cst_21 = arith.constant dense<0xFF800000> : vector<2x8xf32>
    %51 = vector.multi_reduction <maximumf>, %50, %cst_21 [2] : vector<2x8x8xf32> to vector<2x8xf32>
    %52 = vector.shape_cast %51 : vector<2x8xf32> to vector<2x8x1xf32>
    %53 = vector.broadcast %52 : vector<2x8x1xf32> to vector<2x8x8xf32>
    %54 = arith.subf %50, %53 : vector<2x8x8xf32>
    %55 = math.exp %54 : vector<2x8x8xf32>
    %cst_22 = arith.constant dense<0.000000e+00> : vector<2x8xf32>
    %56 = vector.multi_reduction <add>, %55, %cst_22 [2] : vector<2x8x8xf32> to vector<2x8xf32>
    %57 = vector.shape_cast %56 : vector<2x8xf32> to vector<2x8x1xf32>
    %58 = tpu.reciprocal %57 : vector<2x8x1xf32> -> vector<2x8x1xf32>
    %59 = vector.broadcast %58 : vector<2x8x1xf32> to vector<2x8x8xf32>
    %60 = arith.mulf %55, %59 : vector<2x8x8xf32>
    %61 = arith.addf %43, %60 : vector<2x8x8xf32>
    %62 = arith.truncf %60 : vector<2x8x8xf32> to vector<2x8x8xbf16>
    "tpu.trace_start"() <{level = 10 : i32, message = "bqk,bkd->bqd"}> : () -> ()
    %cst_23 = arith.constant dense<0.000000e+00> : vector<2x8x8xf32>
    %63 = tpu.matmul %62, %46, %cst_23 {dimension_numbers = #tpu.dot_dimension_numbers<[2], [1], [1], [2], [0, 0, 0, 1, 1, 2], [0], [0]>} : vector<2x8x8xbf16>, vector<2x8x8xbf16>, vector<2x8x8xf32> -> vector<2x8x8xf32>
    "tpu.trace_stop"() : () -> ()
    %64 = vector.shape_cast %63 : vector<2x8x8xf32> to vector<16x8xf32>
    %65 = arith.truncf %64 : vector<16x8xf32> to vector<16x8xbf16>
    %66 = vector.extract_strided_slice %1 {offsets = [0, 0], sizes = [8, 32], strides = [1, 1]} : vector<32x32xbf16> to vector<8x32xbf16>
    %cst_24 = arith.constant dense<0.000000e+00> : vector<16x32xf32>
    %67 = tpu.matmul %65, %66, %cst_24 {dimension_numbers = #tpu.dot_dimension_numbers<[1], [0], [0], [1], [0, 0, 1, 1], [], []>} : vector<16x8xbf16>, vector<8x32xbf16>, vector<16x32xf32> -> vector<16x32xf32>
    %68 = arith.addf %42, %67 : vector<16x32xf32>
    %69 = vector.extract_strided_slice %35 {offsets = [0, 0, 8], sizes = [2, 8, 8], strides = [1, 1, 1]} : vector<2x8x96xbf16> to vector<2x8x8xbf16>
    %70 = vector.extract_strided_slice %35 {offsets = [0, 0, 40], sizes = [2, 8, 8], strides = [1, 1, 1]} : vector<2x8x96xbf16> to vector<2x8x8xbf16>
    %71 = vector.extract_strided_slice %35 {offsets = [0, 0, 72], sizes = [2, 8, 8], strides = [1, 1, 1]} : vector<2x8x96xbf16> to vector<2x8x8xbf16>
    "tpu.trace_start"() <{level = 10 : i32, message = "bqd,bkd->bqk"}> : () -> ()
    %cst_25 = arith.constant dense<0.000000e+00> : vector<2x8x8xf32>
    %72 = tpu.matmul %69, %70, %cst_25 {dimension_numbers = #tpu.dot_dimension_numbers<[2], [2], [1], [1], [0, 0, 0, 1, 1, 1], [0], [0]>} : vector<2x8x8xbf16>, vector<2x8x8xbf16>, vector<2x8x8xf32> -> vector<2x8x8xf32>
    "tpu.trace_stop"() : () -> ()
    %73 = vector.shape_cast %41 : vector<8x8xf32> to vector<1x8x8xf32>
    %74 = vector.broadcast %73 : vector<1x8x8xf32> to vector<2x8x8xf32>
    %75 = arith.addf %72, %74 : vector<2x8x8xf32>
    %cst_26 = arith.constant dense<0xFF800000> : vector<2x8xf32>
    %76 = vector.multi_reduction <maximumf>, %75, %cst_26 [2] : vector<2x8x8xf32> to vector<2x8xf32>
    %77 = vector.shape_cast %76 : vector<2x8xf32> to vector<2x8x1xf32>
    %78 = vector.broadcast %77 : vector<2x8x1xf32> to vector<2x8x8xf32>
    %79 = arith.subf %75, %78 : vector<2x8x8xf32>
    %80 = math.exp %79 : vector<2x8x8xf32>
    %cst_27 = arith.constant dense<0.000000e+00> : vector<2x8xf32>
    %81 = vector.multi_reduction <add>, %80, %cst_27 [2] : vector<2x8x8xf32> to vector<2x8xf32>
    %82 = vector.shape_cast %81 : vector<2x8xf32> to vector<2x8x1xf32>
    %83 = tpu.reciprocal %82 : vector<2x8x1xf32> -> vector<2x8x1xf32>
    %84 = vector.broadcast %83 : vector<2x8x1xf32> to vector<2x8x8xf32>
    %85 = arith.mulf %80, %84 : vector<2x8x8xf32>
    %86 = arith.addf %61, %85 : vector<2x8x8xf32>
    %87 = arith.truncf %85 : vector<2x8x8xf32> to vector<2x8x8xbf16>
    "tpu.trace_start"() <{level = 10 : i32, message = "bqk,bkd->bqd"}> : () -> ()
    %cst_28 = arith.constant dense<0.000000e+00> : vector<2x8x8xf32>
    %88 = tpu.matmul %87, %71, %cst_28 {dimension_numbers = #tpu.dot_dimension_numbers<[2], [1], [1], [2], [0, 0, 0, 1, 1, 2], [0], [0]>} : vector<2x8x8xbf16>, vector<2x8x8xbf16>, vector<2x8x8xf32> -> vector<2x8x8xf32>
    "tpu.trace_stop"() : () -> ()
    %89 = vector.shape_cast %88 : vector<2x8x8xf32> to vector<16x8xf32>
    %90 = arith.truncf %89 : vector<16x8xf32> to vector<16x8xbf16>
    %91 = vector.extract_strided_slice %1 {offsets = [8, 0], sizes = [8, 32], strides = [1, 1]} : vector<32x32xbf16> to vector<8x32xbf16>
    %cst_29 = arith.constant dense<0.000000e+00> : vector<16x32xf32>
    %92 = tpu.matmul %90, %91, %cst_29 {dimension_numbers = #tpu.dot_dimension_numbers<[1], [0], [0], [1], [0, 0, 1, 1], [], []>} : vector<16x8xbf16>, vector<8x32xbf16>, vector<16x32xf32> -> vector<16x32xf32>
    %93 = arith.addf %68, %92 : vector<16x32xf32>
    %94 = vector.extract_strided_slice %35 {offsets = [0, 0, 16], sizes = [2, 8, 8], strides = [1, 1, 1]} : vector<2x8x96xbf16> to vector<2x8x8xbf16>
    %95 = vector.extract_strided_slice %35 {offsets = [0, 0, 48], sizes = [2, 8, 8], strides = [1, 1, 1]} : vector<2x8x96xbf16> to vector<2x8x8xbf16>
    %96 = vector.extract_strided_slice %35 {offsets = [0, 0, 80], sizes = [2, 8, 8], strides = [1, 1, 1]} : vector<2x8x96xbf16> to vector<2x8x8xbf16>
    "tpu.trace_start"() <{level = 10 : i32, message = "bqd,bkd->bqk"}> : () -> ()
    %cst_30 = arith.constant dense<0.000000e+00> : vector<2x8x8xf32>
    %97 = tpu.matmul %94, %95, %cst_30 {dimension_numbers = #tpu.dot_dimension_numbers<[2], [2], [1], [1], [0, 0, 0, 1, 1, 1], [0], [0]>} : vector<2x8x8xbf16>, vector<2x8x8xbf16>, vector<2x8x8xf32> -> vector<2x8x8xf32>
    "tpu.trace_stop"() : () -> ()
    %98 = vector.shape_cast %41 : vector<8x8xf32> to vector<1x8x8xf32>
    %99 = vector.broadcast %98 : vector<1x8x8xf32> to vector<2x8x8xf32>
    %100 = arith.addf %97, %99 : vector<2x8x8xf32>
    %cst_31 = arith.constant dense<0xFF800000> : vector<2x8xf32>
    %101 = vector.multi_reduction <maximumf>, %100, %cst_31 [2] : vector<2x8x8xf32> to vector<2x8xf32>
    %102 = vector.shape_cast %101 : vector<2x8xf32> to vector<2x8x1xf32>
    %103 = vector.broadcast %102 : vector<2x8x1xf32> to vector<2x8x8xf32>
    %104 = arith.subf %100, %103 : vector<2x8x8xf32>
    %105 = math.exp %104 : vector<2x8x8xf32>
    %cst_32 = arith.constant dense<0.000000e+00> : vector<2x8xf32>
    %106 = vector.multi_reduction <add>, %105, %cst_32 [2] : vector<2x8x8xf32> to vector<2x8xf32>
    %107 = vector.shape_cast %106 : vector<2x8xf32> to vector<2x8x1xf32>
    %108 = tpu.reciprocal %107 : vector<2x8x1xf32> -> vector<2x8x1xf32>
    %109 = vector.broadcast %108 : vector<2x8x1xf32> to vector<2x8x8xf32>
    %110 = arith.mulf %105, %109 : vector<2x8x8xf32>
    %111 = arith.addf %86, %110 : vector<2x8x8xf32>
    %112 = arith.truncf %110 : vector<2x8x8xf32> to vector<2x8x8xbf16>
    "tpu.trace_start"() <{level = 10 : i32, message = "bqk,bkd->bqd"}> : () -> ()
    %cst_33 = arith.constant dense<0.000000e+00> : vector<2x8x8xf32>
    %113 = tpu.matmul %112, %96, %cst_33 {dimension_numbers = #tpu.dot_dimension_numbers<[2], [1], [1], [2], [0, 0, 0, 1, 1, 2], [0], [0]>} : vector<2x8x8xbf16>, vector<2x8x8xbf16>, vector<2x8x8xf32> -> vector<2x8x8xf32>
    "tpu.trace_stop"() : () -> ()
    %114 = vector.shape_cast %113 : vector<2x8x8xf32> to vector<16x8xf32>
    %115 = arith.truncf %114 : vector<16x8xf32> to vector<16x8xbf16>
    %116 = vector.extract_strided_slice %1 {offsets = [16, 0], sizes = [8, 32], strides = [1, 1]} : vector<32x32xbf16> to vector<8x32xbf16>
    %cst_34 = arith.constant dense<0.000000e+00> : vector<16x32xf32>
    %117 = tpu.matmul %115, %116, %cst_34 {dimension_numbers = #tpu.dot_dimension_numbers<[1], [0], [0], [1], [0, 0, 1, 1], [], []>} : vector<16x8xbf16>, vector<8x32xbf16>, vector<16x32xf32> -> vector<16x32xf32>
    %118 = arith.addf %93, %117 : vector<16x32xf32>
    %119 = vector.extract_strided_slice %35 {offsets = [0, 0, 24], sizes = [2, 8, 8], strides = [1, 1, 1]} : vector<2x8x96xbf16> to vector<2x8x8xbf16>
    %120 = vector.extract_strided_slice %35 {offsets = [0, 0, 56], sizes = [2, 8, 8], strides = [1, 1, 1]} : vector<2x8x96xbf16> to vector<2x8x8xbf16>
    %121 = vector.extract_strided_slice %35 {offsets = [0, 0, 88], sizes = [2, 8, 8], strides = [1, 1, 1]} : vector<2x8x96xbf16> to vector<2x8x8xbf16>
    "tpu.trace_start"() <{level = 10 : i32, message = "bqd,bkd->bqk"}> : () -> ()
    %cst_35 = arith.constant dense<0.000000e+00> : vector<2x8x8xf32>
    %122 = tpu.matmul %119, %120, %cst_35 {dimension_numbers = #tpu.dot_dimension_numbers<[2], [2], [1], [1], [0, 0, 0, 1, 1, 1], [0], [0]>} : vector<2x8x8xbf16>, vector<2x8x8xbf16>, vector<2x8x8xf32> -> vector<2x8x8xf32>
    "tpu.trace_stop"() : () -> ()
    %123 = vector.shape_cast %41 : vector<8x8xf32> to vector<1x8x8xf32>
    %124 = vector.broadcast %123 : vector<1x8x8xf32> to vector<2x8x8xf32>
    %125 = arith.addf %122, %124 : vector<2x8x8xf32>
    %cst_36 = arith.constant dense<0xFF800000> : vector<2x8xf32>
    %126 = vector.multi_reduction <maximumf>, %125, %cst_36 [2] : vector<2x8x8xf32> to vector<2x8xf32>
    %127 = vector.shape_cast %126 : vector<2x8xf32> to vector<2x8x1xf32>
    %128 = vector.broadcast %127 : vector<2x8x1xf32> to vector<2x8x8xf32>
    %129 = arith.subf %125, %128 : vector<2x8x8xf32>
    %130 = math.exp %129 : vector<2x8x8xf32>
    %cst_37 = arith.constant dense<0.000000e+00> : vector<2x8xf32>
    %131 = vector.multi_reduction <add>, %130, %cst_37 [2] : vector<2x8x8xf32> to vector<2x8xf32>
    %132 = vector.shape_cast %131 : vector<2x8xf32> to vector<2x8x1xf32>
    %133 = tpu.reciprocal %132 : vector<2x8x1xf32> -> vector<2x8x1xf32>
    %134 = vector.broadcast %133 : vector<2x8x1xf32> to vector<2x8x8xf32>
    %135 = arith.mulf %130, %134 : vector<2x8x8xf32>
    %136 = arith.addf %111, %135 : vector<2x8x8xf32>
    %137 = arith.truncf %135 : vector<2x8x8xf32> to vector<2x8x8xbf16>
    "tpu.trace_start"() <{level = 10 : i32, message = "bqk,bkd->bqd"}> : () -> ()
    %cst_38 = arith.constant dense<0.000000e+00> : vector<2x8x8xf32>
    %138 = tpu.matmul %137, %121, %cst_38 {dimension_numbers = #tpu.dot_dimension_numbers<[2], [1], [1], [2], [0, 0, 0, 1, 1, 2], [0], [0]>} : vector<2x8x8xbf16>, vector<2x8x8xbf16>, vector<2x8x8xf32> -> vector<2x8x8xf32>
    "tpu.trace_stop"() : () -> ()
    %139 = vector.shape_cast %138 : vector<2x8x8xf32> to vector<16x8xf32>
    %140 = arith.truncf %139 : vector<16x8xf32> to vector<16x8xbf16>
    %141 = vector.extract_strided_slice %1 {offsets = [24, 0], sizes = [8, 32], strides = [1, 1]} : vector<32x32xbf16> to vector<8x32xbf16>
    %cst_39 = arith.constant dense<0.000000e+00> : vector<16x32xf32>
    %142 = tpu.matmul %140, %141, %cst_39 {dimension_numbers = #tpu.dot_dimension_numbers<[1], [0], [0], [1], [0, 0, 1, 1], [], []>} : vector<16x8xbf16>, vector<8x32xbf16>, vector<16x32xf32> -> vector<16x32xf32>
    %143 = arith.addf %118, %142 : vector<16x32xf32>
    %144 = arith.addf %7, %143 : vector<16x32xf32>
    %145 = vector.broadcast %3 : vector<1x32xf32> to vector<16x32xf32>
    %146 = arith.addf %144, %145 : vector<16x32xf32>
    %147 = vector.shape_cast %146 : vector<16x32xf32> to vector<2x8x32xf32>
    %c0_40 = arith.constant 0 : index
    %c0_41 = arith.constant 0 : index
    %c0_42 = arith.constant 0 : index
    %148 = vector.load %arg4[%c0_40, %c0_41, %c0_42] : memref<2x8x32xf32, #tpu.memory_space<vmem>>, vector<2x8x32xf32>
    tpu.vector_store %arg4[%c0_40, %c0_41, %c0_42], %147 {strides = array<i32>} : memref<2x8x32xf32, #tpu.memory_space<vmem>>, vector<2x8x32xf32>,
    %cst_43 = arith.constant 2.500000e-01 : f32
    %149 = vector.broadcast %cst_43 : f32 to vector<2x8x8xf32>
    %150 = arith.mulf %136, %149 : vector<2x8x8xf32>
    %c0_44 = arith.constant 0 : index
    %c0_45 = arith.constant 0 : index
    %c0_46 = arith.constant 0 : index
    %151 = vector.load %arg5[%c0_44, %c0_45, %c0_46] : memref<2x8x8xf32, #tpu.memory_space<vmem>>, vector<2x8x8xf32>
    tpu.vector_store %arg5[%c0_44, %c0_45, %c0_46], %150 {strides = array<i32>} : memref<2x8x8xf32, #tpu.memory_space<vmem>>, vector<2x8x8xf32>,
    return
  }
  func.func @transform_0(%arg0: i32) -> (i32, i32, i32) {
    %c0_i32 = arith.constant 0 : i32
    %c0_i32_0 = arith.constant 0 : i32
    %c0_i32_1 = arith.constant 0 : i32
    return %arg0, %c0_i32, %c0_i32_0 : i32, i32, i32
  }
  func.func @transform_1(%arg0: i32) -> (i32, i32) {
    %c0_i32 = arith.constant 0 : i32
    %c0_i32_0 = arith.constant 0 : i32
    %c0_i32_1 = arith.constant 0 : i32
    return %c0_i32, %c0_i32_0 : i32, i32
  }
  func.func @transform_2(%arg0: i32) -> (i32, i32) {
    %c0_i32 = arith.constant 0 : i32
    %c0_i32_0 = arith.constant 0 : i32
    %c0_i32_1 = arith.constant 0 : i32
    return %c0_i32, %c0_i32_0 : i32, i32
  }
  func.func @transform_3(%arg0: i32) -> (i32, i32, i32) {
    %c0_i32 = arith.constant 0 : i32
    %c0_i32_0 = arith.constant 0 : i32
    %c0_i32_1 = arith.constant 0 : i32
    return %arg0, %c0_i32, %c0_i32_0 : i32, i32, i32
  }
  func.func @transform_4(%arg0: i32) -> (i32, i32, i32) {
    %c0_i32 = arith.constant 0 : i32
    %c0_i32_0 = arith.constant 0 : i32
    %c0_i32_1 = arith.constant 0 : i32
    return %arg0, %c0_i32, %c0_i32_0 : i32, i32, i32
  }
}

</mosaic_0001>

<llo_original>
// kernel: tpu_custom_call.1
$region0: #{tpu_custom_call.1}
  #allocation0 [shape = 'u32[]', space=smem, size = 0x4, offset = 0x4, fixed_abs, tag = 'smem constant byte address 0x4 - core index']
  #allocation1 [shape = 'u32[72,128]{1,0:T(1,128)}', space=vmem, size = 0x9000, scoped, tag = 'internal scratch']
  %s0 = inlined_call_operand.hbm [shape: f32[2,8,32], index: 0, kind: input, shape index: {}]
  %s1 = inlined_call_operand.hbm [shape: bf16[32,128], index: 1, kind: input, shape index: {}]
  %s2 = inlined_call_operand.hbm [shape: f32[1,192], index: 2, kind: input, shape index: {}]
  %s3 = inlined_call_operand.hbm [shape: f32[2,8,32], index: 3, kind: output, shape index: {0}]
  %s4 = inlined_call_operand.hbm [shape: f32[2,8,8], index: 4, kind: output, shape index: {1}]
  %5 = xla_tuple %s3, %s4
  %s6 = sld [smem:[#allocation0]]
  $region42: #{tpu_custom_call.1} parent=0
    _
  %s8 = ssub.s32 1, %s6
  %s9 = scalar_select 0, %s8, %s6
  $region1: #{tpu_custom_call.1} parent=0
    #allocation2 [shape = 'u8[8192]{0}', space=vmem, size = 0x2000, scoped, tag = 'input window, operand 0, single buffered']
    #allocation3 [shape = 's32[1]{0}', space=sflag, size = 0x4, scoped, tag = 'scoped memory for tpu_custom_call.1']
    #allocation4 [shape = 's32[1]{0}', space=sflag, size = 0x4, scoped, tag = 'scoped memory for tpu_custom_call.1']
    #allocation5 [shape = 'u8[8192]{0}', space=vmem, size = 0x2000, scoped, tag = 'input window, operand 1, single buffered']
    #allocation6 [shape = 's32[1]{0}', space=sflag, size = 0x4, scoped, tag = 'scoped memory for tpu_custom_call.1']
    #allocation7 [shape = 'u8[1024]{0}', space=vmem, size = 0x400, scoped, tag = 'input window, operand 2, single buffered']
    #allocation8 [shape = 'u8[8192]{0}', space=vmem, size = 0x2000, scoped, tag = 'output window, operand 0, single buffered']
    #allocation9 [shape = 'u8[8192]{0}', space=vmem, size = 0x2000, scoped, tag = 'output window, operand 1, single buffered']
    #allocation10 [shape = 's32[1]{0}', space=sflag, size = 0x4, scoped, tag = 'scoped memory for tpu_custom_call.1']
    %10 = vsyncpa [#allocation3], 0
    %11 = vsyncpa [#allocation6], 0
    %12 = vsyncpa [#allocation4], 0
    %13 = vsyncpa [#allocation10], 0
    // Predicated region
    $region2: #{tpu_custom_call.1} parent=1 // pred_check
      _
    $region3: #{tpu_custom_call.1} parent=1 // pred_check_branch
      %15 = sbr.rel (0) target = $region5
    $region4: #{tpu_custom_call.1} parent=1 // pred_region
      %17 = vsyncadd [#allocation3], 0
      %s18 = sshll.u32 %s0, 4
      %s19 = int_to_ptr.hbm [resolvable:$true] %s18
      %s20 = sshll.u32 [#allocation2], 4
      %s21 = int_to_ptr.vmem [resolvable:$true] %s20
      %26 = dma.hbm_to_vmem [thread:$0]  %s19, 256, %s21, [#allocation3], 128, 128, 8
    $region5: #{tpu_custom_call.1} parent=1 // pred_fallthru
      _
    // Predicated region
    $region6: #{tpu_custom_call.1} parent=1 // pred_check
      _
    $region7: #{tpu_custom_call.1} parent=1 // pred_check_branch
      %28 = sbr.rel (0) target = $region9
    $region8: #{tpu_custom_call.1} parent=1 // pred_region
      %30 = vsyncadd [#allocation6], 0
      %s31 = sshll.u32 %s1, 4
      %s32 = int_to_ptr.hbm [resolvable:$true] %s31
      %s33 = sshll.u32 [#allocation5], 4
      %s34 = int_to_ptr.vmem [resolvable:$true] %s33
      %39 = dma.hbm_to_vmem [thread:$0]  %s32, 256, %s34, [#allocation6], 64, 64, 4
    $region9: #{tpu_custom_call.1} parent=1 // pred_fallthru
      _
    // Predicated region
    $region10: #{tpu_custom_call.1} parent=1 // pred_check
      _
    $region11: #{tpu_custom_call.1} parent=1 // pred_check_branch
      %41 = sbr.rel (0) target = $region13
    $region12: #{tpu_custom_call.1} parent=1 // pred_region
      %43 = vsyncadd [#allocation6], 0
      %s45 = sshll.u32 %s2, 4
      %s46 = int_to_ptr.hbm [resolvable:$true] %s45
      %s47 = sshll.u32 [#allocation7], 4
      %s48 = int_to_ptr.vmem [resolvable:$true] %s47
      %50 = dma.hbm_to_vmem [thread:$0]  %s46, 32, %s48, [#allocation6]
    $region13: #{tpu_custom_call.1} parent=1 // pred_fallthru
      _
    // Predicated region
    $region14: #{tpu_custom_call.1} parent=1 // pred_check
      _
    $region15: #{tpu_custom_call.1} parent=1 // pred_check_branch
      %52 = sbr.rel (0) target = $region17
    $region16: #{tpu_custom_call.1} parent=1 // pred_region
      %54 = dma.done [#allocation3], 256
    $region17: #{tpu_custom_call.1} parent=1 // pred_fallthru
      _
    // Predicated region
    $region18: #{tpu_custom_call.1} parent=1 // pred_check
      _
    $region19: #{tpu_custom_call.1} parent=1 // pred_check_branch
      %56 = sbr.rel (0) target = $region21
    $region20: #{tpu_custom_call.1} parent=1 // pred_region
      %58 = dma.done [#allocation6], 256
    $region21: #{tpu_custom_call.1} parent=1 // pred_fallthru
      _
    // Predicated region
    $region22: #{tpu_custom_call.1} parent=1 // pred_check
      _
    $region23: #{tpu_custom_call.1} parent=1 // pred_check_branch
      %60 = sbr.rel (0) target = $region25
    $region24: #{tpu_custom_call.1} parent=1 // pred_region
      %62 = dma.done [#allocation6], 32
    $region25: #{tpu_custom_call.1} parent=1 // pred_fallthru
      _
    %v64 = vld [vmem:[#allocation5] sm:$0xf]
    %v65 = vld [vmem:[#allocation5 + $0x4] sm:$0xf]
    %v66 = vld [vmem:[#allocation5 + $0x8] sm:$0xf]
    %v67 = vld [vmem:[#allocation5 + $0xc] sm:$0xf]
    %v68 = vld [vmem:[#allocation7] sm:$0x1]
    %v69 = vld [vmem:[#allocation7 + $0x1] sm:$0x1]
    %v70 = vld [vmem:[#allocation2] sm:$0xff]
    %v71 = vld [vmem:[#allocation2 + $0x8] sm:$0xff]
    %vm72 = vcmask 261120
    %v73 = vsel %vm72, %v70, 0.0
    %74 = vadd.xlane.f32.xlu0 %v73
    %v75 = vpop.xlane.xlu0 %74
    %v76 = vsel %vm72, %v71, 0.0
    %77 = vadd.xlane.f32.xlu0 %v76
    %v78 = vpop.xlane.xlu0 %77
    %v79 = vrcp.pop 32.0
    %v80 = vmul.f32 32.0, %v79
    %v81 = vsub.f32 1.0, %v80
    %v82 = vmul.f32 %v79, %v81
    %v83 = vadd.f32 %v79, %v82
    %vm84 = vweird.f32 %v79
    %v85 = vsel %vm84, %v79, %v83
    %v86 = vmul.f32 %v75, %v85
    %v87 = vmul.f32 %v78, %v85
    %v88 = vsub.f32 %v70, %v86
    %v89 = vsub.f32 %v71, %v87
    %v90 = vmul.f32 %v88, %v88
    %v91 = vmul.f32 %v89, %v89
    %v92 = vsel %vm72, %v90, 0.0
    %93 = vadd.xlane.f32.xlu0 %v92
    %v94 = vpop.xlane.xlu0 %93
    %v95 = vsel %vm72, %v91, 0.0
    %96 = vadd.xlane.f32.xlu0 %v95
    %v97 = vpop.xlane.xlu0 %96
    %v98 = vmul.f32 %v94, %v85
    %v99 = vmul.f32 %v97, %v85
    %v100 = vadd.f32 %v98, 1e-05
    %v101 = vadd.f32 %v99, 1e-05
    %v102 = vrsqrt.pop %v100
    %v103 = vmul.f32 %v102, %v100
    %v104 = vmul.f32 %v103, %v102
    %v105 = vmul.f32 0.5, %v104
    %v106 = vsub.f32 1.5, %v105
    %v107 = vmul.f32 %v102, %v106
    %vm108 = vweird.f32 %v100
    %vm109 = vweird.f32 %v102
    %vm110 = vmor %vm108, %vm109
    %v111 = vsel %vm110, %v102, %v107
    %v112 = vrsqrt.pop %v101
    %v113 = vmul.f32 %v112, %v101
    %v114 = vmul.f32 %v113, %v112
    %v115 = vmul.f32 0.5, %v114
    %v116 = vsub.f32 1.5, %v115
    %v117 = vmul.f32 %v112, %v116
    %vm118 = vweird.f32 %v101
    %vm119 = vweird.f32 %v112
    %vm120 = vmor %vm118, %vm119
    %v121 = vsel %vm120, %v112, %v117
    %v122 = vmul.f32 %v88, %v111
    %v123 = vmul.f32 %v89, %v121
    %v125 = vperm.slane %v69, 0
    %v127 = vmul.f32 %v122, %v125
    %v128 = vmul.f32 %v123, %v125
    %129 = vrot.lane.b32.xlu0 %v125, 96
    %v130 = vpop.permute.xlu0 %129
    %v132 = vadd.f32 %v127, %v130
    %v133 = vadd.f32 %v128, %v130
    %v134 = vpack.c.bf16 %v133, %v132
    %v136 = vperm.slane %v68, 0
    %v142 = vunpack.c.l.b16 %v64
    %v143 = vunpack.c.l.b16 %v65
    %v144 = vunpack.c.l.b16 %v66
    %v145 = vunpack.c.l.b16 %v67
    %v146 = vpack.c.b16 %v143, %v142
    %v147 = vpack.c.b16 %v145, %v144
    %v151 = vsel %vm72, %v134, 0
    %153 = vmatpush.bf16.msra.mxu0 0
    %154 = vmatpush.bf16.msra.mxu0 0
    %155 = vmatpush.bf16.msra.mxu0 0
    %156 = vmatpush.bf16.msra.mxu0 0
    %157 = vmatpush.bf16.msra.mxu0 0
    %158 = vmatpush.bf16.msra.mxu0 0
    %159 = vmatpush.bf16.msra.mxu0 %v147
    %160 = vmatpush.bf16.msra.mxu0 %v146
    %161 = vmatmul.bf16.gmra.mxu0 %v151
    %v162 = vpop.f32.mrf.mxu0
    %v163 = vadd.f32 %v136, %v162
    %v164 = vpop.f32.mrf.mxu0
    %v165 = vadd.f32 %v136, %v164
    %166 = vdwg.mxu0
    %v167 = vpack.c.bf16 %v163, %v163
    %v168 = vpack.c.bf16 %v165, %v165
    %v169 = vlaneseq
    %v170 = vshrl.u32 %v169, 7
    %v171 = vlaneseq
    %v172 = vand.u32 %v171, 127
    %vm173 = vcmp.gt.s32.totalorder %v172, %v170
    %v174 = vsel %vm173, -1e+30, 0.0
    %v176 = vunpack.c.l.b16 %v167
    %v177 = vpack.c.b16 %v176, %v176
    %178 = vrot.lane.b32.xlu0 %v177, 96
    %v179 = vpop.permute.xlu0 %178
    %vm180 = vcmask 64512
    %v182 = vsel %vm180, %v167, 0
    %v185 = vsel %vm180, %v179, 0
    %187 = vmatpush.bf16.xpose.msra.mxu0 0
    %188 = vmatpush.bf16.xpose.msra.mxu0 0
    %189 = vmatpush.bf16.xpose.msra.mxu0 0
    %190 = vmatpush.bf16.xpose.msra.mxu0 0
    %191 = vmatpush.bf16.xpose.msra.mxu0 0
    %192 = vmatpush.bf16.xpose.msra.mxu0 0
    %193 = vmatpush.bf16.xpose.msra.mxu0 0
    %194 = vmatpush.bf16.xpose.msra.mxu0 %v185
    %195 = vmatmul.bf16.gmra.mxu0 %v182
    %v196 = vpop.f32.mrf.mxu0
    %v197 = vadd.f32 %v174, %v196
    %v198 = vpop.f32.mrf.mxu0
    %199 = vdwg.mxu0
    %v201 = vunpack.c.l.b16 %v168
    %v202 = vpack.c.b16 %v201, %v201
    %203 = vrot.lane.b32.xlu0 %v202, 96
    %v204 = vpop.permute.xlu0 %203
    %v206 = vsel %vm180, %v168, 0
    %v209 = vsel %vm180, %v204, 0
    %211 = vmatpush.bf16.xpose.msra.mxu0 0
    %212 = vmatpush.bf16.xpose.msra.mxu0 0
    %213 = vmatpush.bf16.xpose.msra.mxu0 0
    %214 = vmatpush.bf16.xpose.msra.mxu0 0
    %215 = vmatpush.bf16.xpose.msra.mxu0 0
    %216 = vmatpush.bf16.xpose.msra.mxu0 0
    %217 = vmatpush.bf16.xpose.msra.mxu0 0
    %218 = vmatpush.bf16.xpose.msra.mxu0 %v209
    %219 = vmatmul.bf16.gmra.mxu0 %v206
    %v220 = vpop.f32.mrf.mxu0
    %v221 = vadd.f32 %v174, %v220
    %v222 = vpop.f32.mrf.mxu0
    %223 = vdwg.mxu0
    %v224 = vsel %vm180, %v197, -inf
    %225 = vmax.xlane.f32.xlu0 %v224
    %v226 = vpop.xlane.xlu0 %225
    %v227 = vsel %vm180, %v221, -inf
    %228 = vmax.xlane.f32.xlu0 %v227
    %v229 = vpop.xlane.xlu0 %228
    %v230 = vsub.f32 %v197, %v226
    %v231 = vsub.f32 %v221, %v229
    %v232 = vmul.f32 %v230, 1.442695
    %v233 = vpow.pop %v232
    %v234 = vmul.f32 %v231, 1.442695
    %v235 = vpow.pop %v234
    %v236 = vsel %vm180, %v233, 0.0
    %237 = vadd.xlane.f32.xlu0 %v236
    %v238 = vpop.xlane.xlu0 %237
    %v239 = vsel %vm180, %v235, 0.0
    %240 = vadd.xlane.f32.xlu0 %v239
    %v241 = vpop.xlane.xlu0 %240
    %v242 = vrcp.pop %v238
    %v243 = vmul.f32 %v238, %v242
    %v244 = vsub.f32 1.0, %v243
    %v245 = vmul.f32 %v242, %v244
    %v246 = vadd.f32 %v242, %v245
    %vm247 = vweird.f32 %v238
    %vm248 = vweird.f32 %v242
    %vm249 = vmor %vm247, %vm248
    %v250 = vsel %vm249, %v242, %v246
    %v251 = vand.u32 2147483647, %v238
    %vm252 = vcmp.eq.f32.partialorder %v251, 8.507059e+37
    %v253 = vand.u32 %v238, 2147483648
    %v254 = vor.u32 1.1754944e-38, %v253
    %v255 = vsel %vm252, %v254, %v250
    %v256 = vrcp.pop %v241
    %v257 = vmul.f32 %v241, %v256
    %v258 = vsub.f32 1.0, %v257
    %v259 = vmul.f32 %v256, %v258
    %v260 = vadd.f32 %v256, %v259
    %vm261 = vweird.f32 %v241
    %vm262 = vweird.f32 %v256
    %vm263 = vmor %vm261, %vm262
    %v264 = vsel %vm263, %v256, %v260
    %v265 = vand.u32 2147483647, %v241
    %vm266 = vcmp.eq.f32.partialorder %v265, 8.507059e+37
    %v267 = vand.u32 %v241, 2147483648
    %v268 = vor.u32 1.1754944e-38, %v267
    %v269 = vsel %vm266, %v268, %v264
    %v270 = vmul.f32 %v233, %v255
    %v271 = vmul.f32 %v235, %v269
    %v272 = vadd.f32 %v270, 0.0
    %v273 = vadd.f32 %v271, 0.0
    %v274 = vpack.c.bf16 %v270, %v270
    %v275 = vpack.c.bf16 %v271, %v271
    %276 = vrot.lane.b32.xlu0 %v177, 64
    %v277 = vpop.permute.xlu0 %276
    %v279 = vsel %vm180, %v274, 0
    %vm281 = vcmask 1043456
    %v283 = vsel %vm281, %v277, 0
    %285 = vmatpush.bf16.msra.mxu0 0
    %286 = vmatpush.bf16.msra.mxu0 0
    %287 = vmatpush.bf16.msra.mxu0 0
    %288 = vmatpush.bf16.msra.mxu0 0
    %289 = vmatpush.bf16.msra.mxu0 0
    %290 = vmatpush.bf16.msra.mxu0 0
    %291 = vmatpush.bf16.msra.mxu0 0
    %292 = vmatpush.bf16.msra.mxu0 %v283
    %293 = vmatmul.bf16.gmra.mxu0 %v279
    %v294 = vpop.f32.mrf.mxu0
    %v295 = vadd.f32 0.0, %v294
    %v296 = vpop.f32.mrf.mxu0
    %297 = vdwg.mxu0
    %298 = vrot.lane.b32.xlu0 %v202, 64
    %v299 = vpop.permute.xlu0 %298
    %v301 = vsel %vm180, %v275, 0
    %v304 = vsel %vm281, %v299, 0
    %306 = vmatpush.bf16.msra.mxu0 0
    %307 = vmatpush.bf16.msra.mxu0 0
    %308 = vmatpush.bf16.msra.mxu0 0
    %309 = vmatpush.bf16.msra.mxu0 0
    %310 = vmatpush.bf16.msra.mxu0 0
    %311 = vmatpush.bf16.msra.mxu0 0
    %312 = vmatpush.bf16.msra.mxu0 0
    %313 = vmatpush.bf16.msra.mxu0 %v304
    %314 = vmatmul.bf16.gmra.mxu0 %v301
    %v315 = vpop.f32.mrf.mxu0
    %v316 = vadd.f32 0.0, %v315
    %v317 = vpop.f32.mrf.mxu0
    %318 = vdwg.mxu0
    %v319 = vpack.c.bf16 %v316, %v295
    %320 = vrot.lane.b32.xlu0 %v177, 120
    %v321 = vpop.permute.xlu0 %320
    %322 = vrot.lane.b32.xlu0 %v177, 88
    %v323 = vpop.permute.xlu0 %322
    %v325 = vsel %vm180, %v321, 0
    %v328 = vsel %vm180, %v323, 0
    %330 = vmatpush.bf16.xpose.msra.mxu0 0
    %331 = vmatpush.bf16.xpose.msra.mxu0 0
    %332 = vmatpush.bf16.xpose.msra.mxu0 0
    %333 = vmatpush.bf16.xpose.msra.mxu0 0
    %334 = vmatpush.bf16.xpose.msra.mxu0 0
    %335 = vmatpush.bf16.xpose.msra.mxu0 0
    %336 = vmatpush.bf16.xpose.msra.mxu0 0
    %337 = vmatpush.bf16.xpose.msra.mxu0 %v328
    %338 = vmatmul.bf16.gmra.mxu0 %v325
    %v339 = vpop.f32.mrf.mxu0
    %v340 = vadd.f32 %v174, %v339
    %v341 = vpop.f32.mrf.mxu0
    %342 = vdwg.mxu0
    %343 = vrot.lane.b32.xlu0 %v202, 120
    %v344 = vpop.permute.xlu0 %343
    %345 = vrot.lane.b32.xlu0 %v202, 88
    %v346 = vpop.permute.xlu0 %345
    %v348 = vsel %vm180, %v344, 0
    %v351 = vsel %vm180, %v346, 0
    %353 = vmatpush.bf16.xpose.msra.mxu0 0
    %354 = vmatpush.bf16.xpose.msra.mxu0 0
    %355 = vmatpush.bf16.xpose.msra.mxu0 0
    %356 = vmatpush.bf16.xpose.msra.mxu0 0
    %357 = vmatpush.bf16.xpose.msra.mxu0 0
    %358 = vmatpush.bf16.xpose.msra.mxu0 0
    %359 = vmatpush.bf16.xpose.msra.mxu0 0
    %360 = vmatpush.bf16.xpose.msra.mxu0 %v351
    %361 = vmatmul.bf16.gmra.mxu0 %v348
    %v362 = vpop.f32.mrf.mxu0
    %v363 = vadd.f32 %v174, %v362
    %v364 = vpop.f32.mrf.mxu0
    %365 = vdwg.mxu0
    %v366 = vsel %vm180, %v340, -inf
    %367 = vmax.xlane.f32.xlu0 %v366
    %v368 = vpop.xlane.xlu0 %367
    %v369 = vsel %vm180, %v363, -inf
    %370 = vmax.xlane.f32.xlu0 %v369
    %v371 = vpop.xlane.xlu0 %370
    %v372 = vsub.f32 %v340, %v368
    %v373 = vsub.f32 %v363, %v371
    %v374 = vmul.f32 %v372, 1.442695
    %v375 = vpow.pop %v374
    %v376 = vmul.f32 %v373, 1.442695
    %v377 = vpow.pop %v376
    %v378 = vsel %vm180, %v375, 0.0
    %379 = vadd.xlane.f32.xlu0 %v378
    %v380 = vpop.xlane.xlu0 %379
    %v381 = vsel %vm180, %v377, 0.0
    %382 = vadd.xlane.f32.xlu0 %v381
    %v383 = vpop.xlane.xlu0 %382
    %v384 = vrcp.pop %v380
    %v385 = vmul.f32 %v380, %v384
    %v386 = vsub.f32 1.0, %v385
    %v387 = vmul.f32 %v384, %v386
    %v388 = vadd.f32 %v384, %v387
    %vm389 = vweird.f32 %v380
    %vm390 = vweird.f32 %v384
    %vm391 = vmor %vm389, %vm390
    %v392 = vsel %vm391, %v384, %v388
    %v393 = vand.u32 2147483647, %v380
    %vm394 = vcmp.eq.f32.partialorder %v393, 8.507059e+37
    %v395 = vand.u32 %v380, 2147483648
    %v396 = vor.u32 1.1754944e-38, %v395
    %v397 = vsel %vm394, %v396, %v392
    %v398 = vrcp.pop %v383
    %v399 = vmul.f32 %v383, %v398
    %v400 = vsub.f32 1.0, %v399
    %v401 = vmul.f32 %v398, %v400
    %v402 = vadd.f32 %v398, %v401
    %vm403 = vweird.f32 %v383
    %vm404 = vweird.f32 %v398
    %vm405 = vmor %vm403, %vm404
    %v406 = vsel %vm405, %v398, %v402
    %v407 = vand.u32 2147483647, %v383
    %vm408 = vcmp.eq.f32.partialorder %v407, 8.507059e+37
    %v409 = vand.u32 %v383, 2147483648
    %v410 = vor.u32 1.1754944e-38, %v409
    %v411 = vsel %vm408, %v410, %v406
    %v412 = vmul.f32 %v375, %v397
    %v413 = vmul.f32 %v377, %v411
    %v414 = vadd.f32 %v272, %v412
    %v415 = vadd.f32 %v273, %v413
    %v416 = vpack.c.bf16 %v412, %v412
    %v417 = vpack.c.bf16 %v413, %v413
    %418 = vrot.lane.b32.xlu0 %v177, 56
    %v419 = vpop.permute.xlu0 %418
    %v421 = vsel %vm180, %v416, 0
    %v424 = vsel %vm281, %v419, 0
    %426 = vmatpush.bf16.msra.mxu0 0
    %427 = vmatpush.bf16.msra.mxu0 0
    %428 = vmatpush.bf16.msra.mxu0 0
    %429 = vmatpush.bf16.msra.mxu0 0
    %430 = vmatpush.bf16.msra.mxu0 0
    %431 = vmatpush.bf16.msra.mxu0 0
    %432 = vmatpush.bf16.msra.mxu0 0
    %433 = vmatpush.bf16.msra.mxu0 %v424
    %434 = vmatmul.bf16.gmra.mxu0 %v421
    %v435 = vpop.f32.mrf.mxu0
    %v436 = vadd.f32 0.0, %v435
    %v437 = vpop.f32.mrf.mxu0
    %438 = vdwg.mxu0
    %439 = vrot.lane.b32.xlu0 %v202, 56
    %v440 = vpop.permute.xlu0 %439
    %v442 = vsel %vm180, %v417, 0
    %v445 = vsel %vm281, %v440, 0
    %447 = vmatpush.bf16.msra.mxu0 0
    %448 = vmatpush.bf16.msra.mxu0 0
    %449 = vmatpush.bf16.msra.mxu0 0
    %450 = vmatpush.bf16.msra.mxu0 0
    %451 = vmatpush.bf16.msra.mxu0 0
    %452 = vmatpush.bf16.msra.mxu0 0
    %453 = vmatpush.bf16.msra.mxu0 0
    %454 = vmatpush.bf16.msra.mxu0 %v445
    %455 = vmatmul.bf16.gmra.mxu0 %v442
    %v456 = vpop.f32.mrf.mxu0
    %v457 = vadd.f32 0.0, %v456
    %v458 = vpop.f32.mrf.mxu0
    %459 = vdwg.mxu0
    %v460 = vpack.c.bf16 %v457, %v436
    %v461 = vpack.c.b16 %v143, %v143
    %462 = vrot.lane.b32.xlu0 %v461, 32
    %v463 = vpop.permute.xlu0 %462
    %v465 = vsel %vm180, %v460, 0
    %v468 = vsel %vm281, %v463, 0
    %470 = vmatpush.bf16.msra.mxu0 0
    %471 = vmatpush.bf16.msra.mxu0 0
    %472 = vmatpush.bf16.msra.mxu0 0
    %473 = vmatpush.bf16.msra.mxu0 0
    %474 = vmatpush.bf16.msra.mxu0 0
    %475 = vmatpush.bf16.msra.mxu0 0
    %476 = vmatpush.bf16.msra.mxu0 0
    %477 = vmatpush.bf16.msra.mxu0 %v468
    %478 = vmatmul.bf16.gmra.mxu0 %v465
    %v479 = vpop.f32.mrf.mxu0
    %v480 = vadd.f32 0.0, %v479
    %v481 = vpop.f32.mrf.mxu0
    %v482 = vadd.f32 0.0, %v481
    %483 = vdwg.mxu0
    %v484 = vpack.c.b16 %v142, %v142
    %485 = vrot.lane.b32.xlu0 %v484, 32
    %v486 = vpop.permute.xlu0 %485
    %v488 = vsel %vm180, %v319, 0
    %v491 = vsel %vm281, %v486, 0
    %493 = vmatpush.bf16.msra.mxu0 0
    %494 = vmatpush.bf16.msra.mxu0 0
    %495 = vmatpush.bf16.msra.mxu0 0
    %496 = vmatpush.bf16.msra.mxu0 0
    %497 = vmatpush.bf16.msra.mxu0 0
    %498 = vmatpush.bf16.msra.mxu0 0
    %499 = vmatpush.bf16.msra.mxu0 0
    %500 = vmatpush.bf16.msra.mxu0 %v491
    %501 = vmatmul.bf16.gmra.mxu0 %v488
    %v502 = vpop.f32.mrf.mxu0
    %v503 = vadd.f32 %v480, %v502
    %v504 = vpop.f32.mrf.mxu0
    %v505 = vadd.f32 %v482, %v504
    %506 = vdwg.mxu0
    %507 = vrot.lane.b32.xlu0 %v177, 112
    %v508 = vpop.permute.xlu0 %507
    %509 = vrot.lane.b32.xlu0 %v177, 80
    %v510 = vpop.permute.xlu0 %509
    %v512 = vsel %vm180, %v508, 0
    %v515 = vsel %vm180, %v510, 0
    %517 = vmatpush.bf16.xpose.msra.mxu0 0
    %518 = vmatpush.bf16.xpose.msra.mxu0 0
    %519 = vmatpush.bf16.xpose.msra.mxu0 0
    %520 = vmatpush.bf16.xpose.msra.mxu0 0
    %521 = vmatpush.bf16.xpose.msra.mxu0 0
    %522 = vmatpush.bf16.xpose.msra.mxu0 0
    %523 = vmatpush.bf16.xpose.msra.mxu0 0
    %524 = vmatpush.bf16.xpose.msra.mxu0 %v515
    %525 = vmatmul.bf16.gmra.mxu0 %v512
    %v526 = vpop.f32.mrf.mxu0
    %v527 = vadd.f32 %v174, %v526
    %v528 = vpop.f32.mrf.mxu0
    %529 = vdwg.mxu0
    %530 = vrot.lane.b32.xlu0 %v202, 112
    %v531 = vpop.permute.xlu0 %530
    %532 = vrot.lane.b32.xlu0 %v202, 80
    %v533 = vpop.permute.xlu0 %532
    %v535 = vsel %vm180, %v531, 0
    %v538 = vsel %vm180, %v533, 0
    %540 = vmatpush.bf16.xpose.msra.mxu0 0
    %541 = vmatpush.bf16.xpose.msra.mxu0 0
    %542 = vmatpush.bf16.xpose.msra.mxu0 0
    %543 = vmatpush.bf16.xpose.msra.mxu0 0
    %544 = vmatpush.bf16.xpose.msra.mxu0 0
    %545 = vmatpush.bf16.xpose.msra.mxu0 0
    %546 = vmatpush.bf16.xpose.msra.mxu0 0
    %547 = vmatpush.bf16.xpose.msra.mxu0 %v538
    %548 = vmatmul.bf16.gmra.mxu0 %v535
    %v549 = vpop.f32.mrf.mxu0
    %v550 = vadd.f32 %v174, %v549
    %v551 = vpop.f32.mrf.mxu0
    %552 = vdwg.mxu0
    %v553 = vsel %vm180, %v527, -inf
    %554 = vmax.xlane.f32.xlu0 %v553
    %v555 = vpop.xlane.xlu0 %554
    %v556 = vsel %vm180, %v550, -inf
    %557 = vmax.xlane.f32.xlu0 %v556
    %v558 = vpop.xlane.xlu0 %557
    %v559 = vsub.f32 %v527, %v555
    %v560 = vsub.f32 %v550, %v558
    %v561 = vmul.f32 %v559, 1.442695
    %v562 = vpow.pop %v561
    %v563 = vmul.f32 %v560, 1.442695
    %v564 = vpow.pop %v563
    %v565 = vsel %vm180, %v562, 0.0
    %566 = vadd.xlane.f32.xlu0 %v565
    %v567 = vpop.xlane.xlu0 %566
    %v568 = vsel %vm180, %v564, 0.0
    %569 = vadd.xlane.f32.xlu0 %v568
    %v570 = vpop.xlane.xlu0 %569
    %v571 = vrcp.pop %v567
    %v572 = vmul.f32 %v567, %v571
    %v573 = vsub.f32 1.0, %v572
    %v574 = vmul.f32 %v571, %v573
    %v575 = vadd.f32 %v571, %v574
    %vm576 = vweird.f32 %v567
    %vm577 = vweird.f32 %v571
    %vm578 = vmor %vm576, %vm577
    %v579 = vsel %vm578, %v571, %v575
    %v580 = vand.u32 2147483647, %v567
    %vm581 = vcmp.eq.f32.partialorder %v580, 8.507059e+37
    %v582 = vand.u32 %v567, 2147483648
    %v583 = vor.u32 1.1754944e-38, %v582
    %v584 = vsel %vm581, %v583, %v579
    %v585 = vrcp.pop %v570
    %v586 = vmul.f32 %v570, %v585
    %v587 = vsub.f32 1.0, %v586
    %v588 = vmul.f32 %v585, %v587
    %v589 = vadd.f32 %v585, %v588
    %vm590 = vweird.f32 %v570
    %vm591 = vweird.f32 %v585
    %vm592 = vmor %vm590, %vm591
    %v593 = vsel %vm592, %v585, %v589
    %v594 = vand.u32 2147483647, %v570
    %vm595 = vcmp.eq.f32.partialorder %v594, 8.507059e+37
    %v596 = vand.u32 %v570, 2147483648
    %v597 = vor.u32 1.1754944e-38, %v596
    %v598 = vsel %vm595, %v597, %v593
    %v599 = vmul.f32 %v562, %v584
    %v600 = vmul.f32 %v564, %v598
    %v601 = vadd.f32 %v414, %v599
    %v602 = vadd.f32 %v415, %v600
    %v603 = vpack.c.bf16 %v599, %v599
    %v604 = vpack.c.bf16 %v600, %v600
    %605 = vrot.lane.b32.xlu0 %v177, 48
    %v606 = vpop.permute.xlu0 %605
    %v608 = vsel %vm180, %v603, 0
    %v611 = vsel %vm281, %v606, 0
    %613 = vmatpush.bf16.msra.mxu0 0
    %614 = vmatpush.bf16.msra.mxu0 0
    %615 = vmatpush.bf16.msra.mxu0 0
    %616 = vmatpush.bf16.msra.mxu0 0
    %617 = vmatpush.bf16.msra.mxu0 0
    %618 = vmatpush.bf16.msra.mxu0 0
    %619 = vmatpush.bf16.msra.mxu0 0
    %620 = vmatpush.bf16.msra.mxu0 %v611
    %621 = vmatmul.bf16.gmra.mxu0 %v608
    %v622 = vpop.f32.mrf.mxu0
    %v623 = vadd.f32 0.0, %v622
    %v624 = vpop.f32.mrf.mxu0
    %625 = vdwg.mxu0
    %626 = vrot.lane.b32.xlu0 %v202, 48
    %v627 = vpop.permute.xlu0 %626
    %v629 = vsel %vm180, %v604, 0
    %v632 = vsel %vm281, %v627, 0
    %634 = vmatpush.bf16.msra.mxu0 0
    %635 = vmatpush.bf16.msra.mxu0 0
    %636 = vmatpush.bf16.msra.mxu0 0
    %637 = vmatpush.bf16.msra.mxu0 0
    %638 = vmatpush.bf16.msra.mxu0 0
    %639 = vmatpush.bf16.msra.mxu0 0
    %640 = vmatpush.bf16.msra.mxu0 0
    %641 = vmatpush.bf16.msra.mxu0 %v632
    %642 = vmatmul.bf16.gmra.mxu0 %v629
    %v643 = vpop.f32.mrf.mxu0
    %v644 = vadd.f32 0.0, %v643
    %v645 = vpop.f32.mrf.mxu0
    %646 = vdwg.mxu0
    %v647 = vpack.c.bf16 %v644, %v623
    %v648 = vpack.c.b16 %v144, %v144
    %649 = vrot.lane.b32.xlu0 %v648, 32
    %v650 = vpop.permute.xlu0 %649
    %v652 = vsel %vm180, %v647, 0
    %v655 = vsel %vm281, %v650, 0
    %657 = vmatpush.bf16.msra.mxu0 0
    %658 = vmatpush.bf16.msra.mxu0 0
    %659 = vmatpush.bf16.msra.mxu0 0
    %660 = vmatpush.bf16.msra.mxu0 0
    %661 = vmatpush.bf16.msra.mxu0 0
    %662 = vmatpush.bf16.msra.mxu0 0
    %663 = vmatpush.bf16.msra.mxu0 0
    %664 = vmatpush.bf16.msra.mxu0 %v655
    %665 = vmatmul.bf16.gmra.mxu0 %v652
    %v666 = vpop.f32.mrf.mxu0
    %v667 = vadd.f32 0.0, %v666
    %v668 = vpop.f32.mrf.mxu0
    %v669 = vadd.f32 0.0, %v668
    %670 = vdwg.mxu0
    %v671 = vadd.f32 %v503, %v667
    %v672 = vadd.f32 %v505, %v669
    %673 = vrot.lane.b32.xlu0 %v177, 104
    %v674 = vpop.permute.xlu0 %673
    %675 = vrot.lane.b32.xlu0 %v177, 72
    %v676 = vpop.permute.xlu0 %675
    %v678 = vsel %vm180, %v674, 0
    %v681 = vsel %vm180, %v676, 0
    %683 = vmatpush.bf16.xpose.msra.mxu0 0
    %684 = vmatpush.bf16.xpose.msra.mxu0 0
    %685 = vmatpush.bf16.xpose.msra.mxu0 0
    %686 = vmatpush.bf16.xpose.msra.mxu0 0
    %687 = vmatpush.bf16.xpose.msra.mxu0 0
    %688 = vmatpush.bf16.xpose.msra.mxu0 0
    %689 = vmatpush.bf16.xpose.msra.mxu0 0
    %690 = vmatpush.bf16.xpose.msra.mxu0 %v681
    %691 = vmatmul.bf16.gmra.mxu0 %v678
    %v692 = vpop.f32.mrf.mxu0
    %v693 = vadd.f32 %v174, %v692
    %v694 = vpop.f32.mrf.mxu0
    %695 = vdwg.mxu0
    %696 = vrot.lane.b32.xlu0 %v202, 104
    %v697 = vpop.permute.xlu0 %696
    %698 = vrot.lane.b32.xlu0 %v202, 72
    %v699 = vpop.permute.xlu0 %698
    %v701 = vsel %vm180, %v697, 0
    %v704 = vsel %vm180, %v699, 0
    %706 = vmatpush.bf16.xpose.msra.mxu0 0
    %707 = vmatpush.bf16.xpose.msra.mxu0 0
    %708 = vmatpush.bf16.xpose.msra.mxu0 0
    %709 = vmatpush.bf16.xpose.msra.mxu0 0
    %710 = vmatpush.bf16.xpose.msra.mxu0 0
    %711 = vmatpush.bf16.xpose.msra.mxu0 0
    %712 = vmatpush.bf16.xpose.msra.mxu0 0
    %713 = vmatpush.bf16.xpose.msra.mxu0 %v704
    %714 = vmatmul.bf16.gmra.mxu0 %v701
    %v715 = vpop.f32.mrf.mxu0
    %v716 = vadd.f32 %v174, %v715
    %v717 = vpop.f32.mrf.mxu0
    %718 = vdwg.mxu0
    %v719 = vsel %vm180, %v693, -inf
    %720 = vmax.xlane.f32.xlu0 %v719
    %v721 = vpop.xlane.xlu0 %720
    %v722 = vsel %vm180, %v716, -inf
    %723 = vmax.xlane.f32.xlu0 %v722
    %v724 = vpop.xlane.xlu0 %723
    %v725 = vsub.f32 %v693, %v721
    %v726 = vsub.f32 %v716, %v724
    %v727 = vmul.f32 %v725, 1.442695
    %v728 = vpow.pop %v727
    %v729 = vmul.f32 %v726, 1.442695
    %v730 = vpow.pop %v729
    %v731 = vsel %vm180, %v728, 0.0
    %732 = vadd.xlane.f32.xlu0 %v731
    %v733 = vpop.xlane.xlu0 %732
    %v734 = vsel %vm180, %v730, 0.0
    %735 = vadd.xlane.f32.xlu0 %v734
    %v736 = vpop.xlane.xlu0 %735
    %v737 = vrcp.pop %v733
    %v738 = vmul.f32 %v733, %v737
    %v739 = vsub.f32 1.0, %v738
    %v740 = vmul.f32 %v737, %v739
    %v741 = vadd.f32 %v737, %v740
    %vm742 = vweird.f32 %v733
    %vm743 = vweird.f32 %v737
    %vm744 = vmor %vm742, %vm743
    %v745 = vsel %vm744, %v737, %v741
    %v746 = vand.u32 2147483647, %v733
    %vm747 = vcmp.eq.f32.partialorder %v746, 8.507059e+37
    %v748 = vand.u32 %v733, 2147483648
    %v749 = vor.u32 1.1754944e-38, %v748
    %v750 = vsel %vm747, %v749, %v745
    %v751 = vrcp.pop %v736
    %v752 = vmul.f32 %v736, %v751
    %v753 = vsub.f32 1.0, %v752
    %v754 = vmul.f32 %v751, %v753
    %v755 = vadd.f32 %v751, %v754
    %vm756 = vweird.f32 %v736
    %vm757 = vweird.f32 %v751
    %vm758 = vmor %vm756, %vm757
    %v759 = vsel %vm758, %v751, %v755
    %v760 = vand.u32 2147483647, %v736
    %vm761 = vcmp.eq.f32.partialorder %v760, 8.507059e+37
    %v762 = vand.u32 %v736, 2147483648
    %v763 = vor.u32 1.1754944e-38, %v762
    %v764 = vsel %vm761, %v763, %v759
    %v765 = vmul.f32 %v728, %v750
    %v766 = vmul.f32 %v730, %v764
    %v767 = vadd.f32 %v601, %v765
    %v768 = vadd.f32 %v602, %v766
    %v769 = vpack.c.bf16 %v765, %v765
    %v770 = vpack.c.bf16 %v766, %v766
    %771 = vrot.lane.b32.xlu0 %v177, 40
    %v772 = vpop.permute.xlu0 %771
    %v774 = vsel %vm180, %v769, 0
    %v777 = vsel %vm281, %v772, 0
    %779 = vmatpush.bf16.msra.mxu0 0
    %780 = vmatpush.bf16.msra.mxu0 0
    %781 = vmatpush.bf16.msra.mxu0 0
    %782 = vmatpush.bf16.msra.mxu0 0
    %783 = vmatpush.bf16.msra.mxu0 0
    %784 = vmatpush.bf16.msra.mxu0 0
    %785 = vmatpush.bf16.msra.mxu0 0
    %786 = vmatpush.bf16.msra.mxu0 %v777
    %787 = vmatmul.bf16.gmra.mxu0 %v774
    %v788 = vpop.f32.mrf.mxu0
    %v789 = vadd.f32 0.0, %v788
    %v790 = vpop.f32.mrf.mxu0
    %791 = vdwg.mxu0
    %792 = vrot.lane.b32.xlu0 %v202, 40
    %v793 = vpop.permute.xlu0 %792
    %v795 = vsel %vm180, %v770, 0
    %v798 = vsel %vm281, %v793, 0
    %800 = vmatpush.bf16.msra.mxu0 0
    %801 = vmatpush.bf16.msra.mxu0 0
    %802 = vmatpush.bf16.msra.mxu0 0
    %803 = vmatpush.bf16.msra.mxu0 0
    %804 = vmatpush.bf16.msra.mxu0 0
    %805 = vmatpush.bf16.msra.mxu0 0
    %806 = vmatpush.bf16.msra.mxu0 0
    %807 = vmatpush.bf16.msra.mxu0 %v798
    %808 = vmatmul.bf16.gmra.mxu0 %v795
    %v809 = vpop.f32.mrf.mxu0
    %v810 = vadd.f32 0.0, %v809
    %v811 = vpop.f32.mrf.mxu0
    %812 = vdwg.mxu0
    %v813 = vpack.c.bf16 %v810, %v789
    %v814 = vpack.c.b16 %v145, %v145
    %815 = vrot.lane.b32.xlu0 %v814, 32
    %v816 = vpop.permute.xlu0 %815
    %v818 = vsel %vm180, %v813, 0
    %v821 = vsel %vm281, %v816, 0
    %823 = vmatpush.bf16.msra.mxu0 0
    %824 = vmatpush.bf16.msra.mxu0 0
    %825 = vmatpush.bf16.msra.mxu0 0
    %826 = vmatpush.bf16.msra.mxu0 0
    %827 = vmatpush.bf16.msra.mxu0 0
    %828 = vmatpush.bf16.msra.mxu0 0
    %829 = vmatpush.bf16.msra.mxu0 0
    %830 = vmatpush.bf16.msra.mxu0 %v821
    %831 = vmatmul.bf16.gmra.mxu0 %v818
    %v832 = vpop.f32.mrf.mxu0
    %v833 = vadd.f32 0.0, %v832
    %v834 = vpop.f32.mrf.mxu0
    %v835 = vadd.f32 0.0, %v834
    %836 = vdwg.mxu0
    %v837 = vadd.f32 %v671, %v833
    %v838 = vadd.f32 %v672, %v835
    %v839 = vadd.f32 %v70, %v837
    %v840 = vadd.f32 %v71, %v838
    %841 = vrot.lane.b32.xlu0 %v136, 32
    %v842 = vpop.permute.xlu0 %841
    %v844 = vadd.f32 %v839, %v842
    %v845 = vadd.f32 %v840, %v842
    %846 = vst.msk [vmem:[#allocation8] sm:$0xff] %vm72, %v844
    %847 = vst.msk [vmem:[#allocation8 + $0x8] sm:$0xff] %vm72, %v845
    %v848 = vmul.f32 %v767, 0.25
    %v849 = vmul.f32 %v768, 0.25
    %850 = vst.msk [vmem:[#allocation9] sm:$0xff] %vm180, %v848
    %851 = vst.msk [vmem:[#allocation9 + $0x8] sm:$0xff] %vm180, %v849
    // Predicated region
    $region26: #{tpu_custom_call.1} parent=1 // pred_check
      _
    $region27: #{tpu_custom_call.1} parent=1 // pred_check_branch
      %853 = sbr.rel (0) target = $region29
    $region28: #{tpu_custom_call.1} parent=1 // pred_region
      %855 = vsyncadd [#allocation4], 0
      %s856 = sshll.u32 [#allocation8], 4
      %s857 = int_to_ptr.vmem [resolvable:$true] %s856
      %s858 = sshll.u32 %s3, 4
      %s859 = int_to_ptr.hbm [resolvable:$true] %s858
      %864 = dma.vmem_to_hbm [thread:$0]  %s857, 256, %s859, [#allocation4], 128, 128, 8
    $region29: #{tpu_custom_call.1} parent=1 // pred_fallthru
      _
    // Predicated region
    $region30: #{tpu_custom_call.1} parent=1 // pred_check
      _
    $region31: #{tpu_custom_call.1} parent=1 // pred_check_branch
      %866 = sbr.rel (0) target = $region33
    $region32: #{tpu_custom_call.1} parent=1 // pred_region
      %868 = vsyncadd [#allocation10], 0
      %s869 = sshll.u32 [#allocation9], 4
      %s870 = int_to_ptr.vmem [resolvable:$true] %s869
      %s871 = sshll.u32 %s4, 4
      %s872 = int_to_ptr.hbm [resolvable:$true] %s871
      %877 = dma.vmem_to_hbm [thread:$0]  %s870, 256, %s872, [#allocation10], 128, 128, 8
    $region33: #{tpu_custom_call.1} parent=1 // pred_fallthru
      _
    // Predicated region
    $region34: #{tpu_custom_call.1} parent=1 // pred_check
      _
    $region35: #{tpu_custom_call.1} parent=1 // pred_check_branch
      %879 = sbr.rel (0) target = $region37
    $region36: #{tpu_custom_call.1} parent=1 // pred_region
      %881 = dma.done [#allocation4], 256
    $region37: #{tpu_custom_call.1} parent=1 // pred_fallthru
      _
    // Predicated region
    $region38: #{tpu_custom_call.1} parent=1 // pred_check
      _
    $region39: #{tpu_custom_call.1} parent=1 // pred_check_branch
      %883 = sbr.rel (0) target = $region41
    $region40: #{tpu_custom_call.1} parent=1 // pred_region
      %885 = dma.done [#allocation10], 256
    $region41: #{tpu_custom_call.1} parent=1 // pred_fallthru
      _
    %886 = vsyncpa [#allocation3], 1
    %887 = vsyncpa [#allocation6], 1
    %888 = vsyncpa [#allocation4], 1
    %889 = vsyncpa [#allocation10], 1

</llo_original>
